<compile_context>
chip_gen: v6e
topology: v6e:2x2x1
jax: 0.10.0
libtpu: 0.0.40
codegen_flags: <defaults>
</compile_context>

<pallas_src>
from functools import partial

import jax
import jax.numpy as jnp
from jax.experimental import pallas as pl
from jax.experimental.pallas import tpu as pltpu


def _round_up(x, m):
    return ((x + m - 1) // m) * m


def _cdiv(a, b):
    return (a + b - 1) // b


def _num_tensorcores():
    """Best-effort probe of TensorCores per chip (v7x: 2, v5e/v6e: 1)."""
    try:
        info = pltpu.get_tpu_info()
        for attr in ("num_cores", "tensorcores_per_chip", "num_tensorcores"):
            v = getattr(info, attr, None)
            if isinstance(v, int) and v > 0:
                return v
    except Exception:
        pass
    try:
        kind = jax.devices()[0].device_kind.lower()
        if "v7" in kind:
            return 2
    except Exception:
        pass
    return 1


def _choose_tiling(num_points, num_tc, max_tile_p=8192):
    """Pick (tile_p, grid_steps, p_pad): few, large, lane-dense tiles.

    Single-TC chips get the minimum number of steps (usually 1); multi-TC
    chips get an even (per-core-balanced) step count.  Padding waste is at
    most 127 lanes per step (P is only padded to the 128-lane granularity of
    the chosen tiling, never to a huge fixed tile).
    """
    p128 = _round_up(max(num_points, 1), 128)
    n_tiles = p128 // 128                       # number of 128-lane columns
    steps = max(1, _cdiv(p128, max_tile_p))
    if num_tc > 1:
        steps = _round_up(steps, num_tc)        # keep both TensorCores busy
    steps = min(steps, n_tiles)
    tile_p = _cdiv(n_tiles, steps) * 128
    p_pad = steps * tile_p
    return tile_p, steps, p_pad


def prepare_points(anchor_points_list, strides, *, max_tile_p=8192,
                   num_tc=None, dtype=jnp.float32):
    """Static per-feature-map-config packing.  Call ONCE and reuse per image.

    Returns dict with pt_packed [3, P_pad] (rows = px, py, 1/stride; padded
    lanes hold a large-negative sentinel so they fall outside every gt box),
    plus num_points / tile_p / grid_steps / p_pad.
    """
    if num_tc is None:
        num_tc = _num_tensorcores()
    num_points = sum(int(p.shape[0]) for p in anchor_points_list)
    tile_p, steps, p_pad = _choose_tiling(num_points, num_tc, max_tile_p)
    pad = p_pad - num_points

    points = jnp.concatenate([p.astype(dtype) for p in anchor_points_list],
                             axis=0)                                   # [P, 2]
    inv_stride = jnp.concatenate(
        [jnp.full((int(p.shape[0]),), 1.0 / float(s), dtype=dtype)
         for p, s in zip(anchor_points_list, strides)], axis=0)        # [P]

    sentinel = -1.0e8   # outside any real gt box; also drives exp() -> 0
    pt_packed = jnp.stack(
        [jnp.pad(points[:, 0], (0, pad), constant_values=sentinel),
         jnp.pad(points[:, 1], (0, pad), constant_values=sentinel),
         jnp.pad(inv_stride, (0, pad), constant_values=0.0)], axis=0)  # [3, P_pad]

    return dict(pt_packed=pt_packed, num_points=num_points,
                tile_p=tile_p, grid_steps=steps, p_pad=p_pad)


# -------------------------- kernels --------------------------------------- #

def _prior_weights(pt_ref, gt_ref, soft_prior):
    px = pt_ref[0:1, :]            # [1, TP]
    py = pt_ref[1:2, :]
    inv = pt_ref[2:3, :]           # 1 / stride

    cx = gt_ref[:, 0:1]            # [G8, 1]
    cy = gt_ref[:, 1:2]
    mx = gt_ref[:, 2:3]
    my = gt_ref[:, 3:4]
    ax = gt_ref[:, 4:5]            # -0.5 / sigma_x^2
    ay = gt_ref[:, 5:6]            # -0.5 / sigma_y^2

    dx = (px - cx) * inv - mx      # [G8, TP]
    dy = (py - cy) * inv - my
    # exp(-dx^2/(2 sx^2)) * exp(-dy^2/(2 sy^2)) == exp(dx^2*ax + dy^2*ay)
    w = jnp.exp(dx * dx * ax + dy * dy * ay)
    if not soft_prior:
        w = jnp.where(w > jnp.float32(0.3), jnp.float32(1.0), jnp.float32(0.0))
    return w, px, py


def _center_prior_kernel_bbox(pt_ref, gt_ref, out_ref, *, soft_prior):
    # inside-gt-bbox mask recomputed in-kernel from gt corners (cols 6..9):
    # removes the [G, P] int8 HBM stream and the wrapper cast+transpose pass.
    w, px, py = _prior_weights(pt_ref, gt_ref, soft_prior)
    x1 = gt_ref[:, 6:7]
    y1 = gt_ref[:, 7:8]
    x2 = gt_ref[:, 8:9]
    y2 = gt_ref[:, 9:10]
    inside = (px >= x1) & (px <= x2) & (py >= y1) & (py <= y2)
    out_ref[...] = jnp.where(inside, w, jnp.float32(0.0)).astype(out_ref.dtype)


def _center_prior_kernel_ext(pt_ref, gt_ref, mask_ref, out_ref, *, soft_prior):
    # strict-fidelity path: apply the externally supplied mask (int8 stream).
    w, _, _ = _prior_weights(pt_ref, gt_ref, soft_prior)
    out_ref[...] = jnp.where(mask_ref[...] != 0, w,
                             jnp.float32(0.0)).astype(out_ref.dtype)


# -------------------------- wrapper ---------------------------------------- #

def center_prior_forward(prepared_or_points, gt_bboxes, labels,
                         inside_gt_bbox_mask, mean, sigma,
                         strides=(8, 16, 32, 64, 128), soft_prior=True,
                         mask_mode="bbox", transpose_to_points_major=True,
                         out_dtype=jnp.float32, max_tile_p=8192):
    """Mirrors CenterPrior.forward.

    prepared_or_points: dict from prepare_points() (preferred: hoists static
      point packing out of the per-image path) or the raw anchor_points_list.
    mask_mode: "bbox" recomputes inside_gt_bbox_mask in-kernel from gt corners
      (matches the standard >=/<= mask producer); "external" streams the
      provided mask for strict fidelity to arbitrary masks.
    Returns (center_prior_weights [P, G] (or [G, P] if
      transpose_to_points_major=False), inside_gt_bbox_mask).
    """
    if isinstance(prepared_or_points, dict):
        prep = prepared_or_points
    else:
        prep = prepare_points(prepared_or_points, strides, max_tile_p=max_tile_p)

    num_points = prep["num_points"]
    num_gts = int(labels.shape[0])
    if num_gts == 0:
        return (jnp.zeros((num_points, 0), gt_bboxes.dtype),
                inside_gt_bbox_mask)

    dtype = jnp.float32
    tile_p, steps, p_pad = prep["tile_p"], prep["grid_steps"], prep["p_pad"]
    pt_packed = prep["pt_packed"]

    g8 = _round_up(num_gts, 8)          # full-sublane, unmasked [G8, TP] stores
    gpad = g8 - num_gts

    # ---- per-GT slab [G8, 10]: cx, cy, mx, my, ax, ay, x1, y1, x2, y2 ------
    gt_bboxes = gt_bboxes.astype(dtype)
    gt_cx = (gt_bboxes[:, 0] + gt_bboxes[:, 2]) * 0.5
    gt_cy = (gt_bboxes[:, 1] + gt_bboxes[:, 3]) * 0.5
    inst_mean = mean[labels].astype(dtype)                     # [G, 2]
    inst_sigma = sigma[labels].astype(dtype)                   # [G, 2]
    neg_half_inv_s2 = -0.5 / (inst_sigma * inst_sigma)         # [G, 2]
    gt_packed = jnp.stack(
        [gt_cx, gt_cy, inst_mean[:, 0], inst_mean[:, 1],
         neg_half_inv_s2[:, 0], neg_half_inv_s2[:, 1],
         gt_bboxes[:, 0], gt_bboxes[:, 1], gt_bboxes[:, 2], gt_bboxes[:, 3]],
        axis=1)                                                # [G, 10]
    gt_packed = jnp.pad(gt_packed, ((0, gpad), (0, 0)))        # [G8, 10]

    pt_spec = pl.BlockSpec((3, tile_p), lambda i: (0, i))
    gt_spec = pl.BlockSpec((g8, 10), lambda i: (0, 0))
    out_spec = pl.BlockSpec((g8, tile_p), lambda i: (0, i))
    cparams = pltpu.CompilerParams(dimension_semantics=("parallel",))
    out_shape = jax.ShapeDtypeStruct((g8, p_pad), out_dtype)

    if mask_mode == "bbox":
        out_t = pl.pallas_call(
            partial(_center_prior_kernel_bbox, soft_prior=soft_prior),
            out_shape=out_shape,
            grid=(steps,),
            in_specs=[pt_spec, gt_spec],
            out_specs=out_spec,
            compiler_params=cparams,
        )(pt_packed, gt_packed)
    else:
        mask_i8 = jnp.pad(inside_gt_bbox_mask.astype(jnp.int8).T,
                          ((0, gpad), (0, p_pad - num_points)))   # [G8, P_pad]
        mask_spec = pl.BlockSpec((g8, tile_p), lambda i: (0, i))
        out_t = pl.pallas_call(
            partial(_center_prior_kernel_ext, soft_prior=soft_prior),
            out_shape=out_shape,
            grid=(steps,),
            in_specs=[pt_spec, gt_spec, mask_spec],
            out_specs=out_spec,
            compiler_params=cparams,
        )(pt_packed, gt_packed, mask_i8)

    weights = out_t[:num_gts, :num_points]          # [G, P]
    if transpose_to_points_major:
        weights = weights.T                          # module's [P, G] layout
    return weights, inside_gt_bbox_mask


# -------------------------- reference & demo ------------------------------- #

def _reference(anchor_points_list, gt_bboxes, labels, inside_gt_bbox_mask,
               mean, sigma, strides, soft_prior=True):
    """Pure-JAX port of the PyTorch forward, for correctness checking."""
    outs = []
    gt_cx = (gt_bboxes[:, 0] + gt_bboxes[:, 2]) / 2.0
    gt_cy = (gt_bboxes[:, 1] + gt_bboxes[:, 3]) / 2.0
    gt_center = jnp.stack([gt_cx, gt_cy], axis=1)[None]          # [1, G, 2]
    inst_center = mean[labels][None]
    inst_sigma = sigma[labels][None]
    for pts, s in zip(anchor_points_list, strides):
        slp = pts[:, None, :]                                    # [N, 1, 2]
        dist = ((slp - gt_center) / float(s) - inst_center) ** 2
        cp = jnp.prod(jnp.exp(-dist / (2 * inst_sigma ** 2)), axis=-1)
        outs.append(cp)
    w = jnp.concatenate(outs, axis=0)
    if not soft_prior:
        w = jnp.where(w > 0.3, 1.0, 0.0)
    w = jnp.where(inside_gt_bbox_mask, w, 0.0)
    return w


def _make_anchor_points(feat_sizes, strides, dtype=jnp.float32):
    pts = []
    for (h, w), s in zip(feat_sizes, strides):
        xs = (jnp.arange(w, dtype=dtype) + 0.5) * s
        ys = (jnp.arange(h, dtype=dtype) + 0.5) * s
        yy, xx = jnp.meshgrid(ys, xs, indexing="ij")
        pts.append(jnp.stack([xx.reshape(-1), yy.reshape(-1)], axis=-1))
    return pts


if __name__ == "__main__":
    key = jax.random.PRNGKey(0)
    num_classes = 80
    strides = (8, 16, 32, 64, 128)
    feat_sizes = [(8, 8), (4, 4), (2, 2), (1, 1), (1, 1)]   # small, 5 levels

    # deterministic "parameters" (as in __init__: mean=0, sigma=1.11)
    mean = jnp.zeros((num_classes, 2), jnp.float32)
    sigma = jnp.ones((num_classes, 2), jnp.float32) + 0.11

    anchor_points_list = _make_anchor_points(feat_sizes, strides)
    num_points = sum(int(p.shape[0]) for p in anchor_points_list)   # 86
    num_gts = 6                                                     # not a multiple of 8

    k1, k2, k3 = jax.random.split(key, 3)
    xy1 = jax.random.uniform(k1, (num_gts, 2), jnp.float32, 0.0, 60.0)
    wh = jax.random.uniform(k2, (num_gts, 2), jnp.float32, 8.0, 64.0)
    gt_bboxes = jnp.concatenate([xy1, xy1 + wh], axis=-1)           # [G, 4]
    labels = jax.random.randint(k3, (num_gts,), 0, num_classes)

    # inside_gt_bbox_mask: point center inside gt box (standard >=/<= producer)
    all_pts = jnp.concatenate(anchor_points_list, axis=0)           # [P, 2]
    px, py = all_pts[:, 0:1], all_pts[:, 1:2]
    inside_gt_bbox_mask = ((px >= gt_bboxes[None, :, 0]) &
                           (px <= gt_bboxes[None, :, 2]) &
                           (py >= gt_bboxes[None, :, 1]) &
                           (py <= gt_bboxes[None, :, 3]))           # [P, G] bool

    # hoisted, per-feature-map-config packing: built ONCE, reused per call
    prep = prepare_points(anchor_points_list, strides)

    ok = True
    for soft_prior in (True, False):
        ref = _reference(anchor_points_list, gt_bboxes, labels,
                         inside_gt_bbox_mask, mean, sigma, strides,
                         soft_prior=soft_prior)
        for mask_mode in ("bbox", "external"):
            weights, mask_out = center_prior_forward(
                prep, gt_bboxes, labels, inside_gt_bbox_mask, mean, sigma,
                strides=strides, soft_prior=soft_prior, mask_mode=mask_mode)
            weights = jax.block_until_ready(weights)
            assert weights.shape == (num_points, num_gts)
            assert mask_out.shape == inside_gt_bbox_mask.shape
            ok &= bool(jnp.allclose(weights, ref, atol=1e-5, rtol=1e-5))

    # exercise the num_gts == 0 early-return path
    w0, m0 = center_prior_forward(prep, gt_bboxes[:0], labels[:0],
                                  inside_gt_bbox_mask[:, :0], mean, sigma,
                                  strides=strides)
    ok &= (w0.shape == (num_points, 0))

    assert ok
    print("KERNEL_OK")
</pallas_src>

<mosaic_0001>
module attributes {stable_mosaic.version = 11 : i64} {
  func.func @_center_prior_kernel_bbox(%arg0: i32, %arg1: memref<3x128xf32, #tpu.memory_space<vmem>>, %arg2: memref<8x10xf32, #tpu.memory_space<vmem>>, %arg3: memref<8x128xf32, #tpu.memory_space<vmem>>) attributes {dimension_semantics = [#tpu.dimension_semantics<parallel>], iteration_bounds = array<i64: 1>, scalar_prefetch = 0 : i64, scratch_operands = 0 : i64, tpu.core_type = #tpu.core_type<tc>, window_params = [{transform_indices = @transform_0, window_bounds = array<i64: 3, 128>}, {pipeline_mode = #tpu.pipeline_mode<synchronous>, transform_indices = @transform_1, window_bounds = array<i64: 8, 10>}, {transform_indices = @transform_2, window_bounds = array<i64: 8, 128>}]} {
    %c0 = arith.constant 0 : index
    %c0_0 = arith.constant 0 : index
    %0 = vector.load %arg1[%c0, %c0_0] : memref<3x128xf32, #tpu.memory_space<vmem>>, vector<1x128xf32>
    %c1 = arith.constant 1 : index
    %c0_1 = arith.constant 0 : index
    %1 = vector.load %arg1[%c1, %c0_1] : memref<3x128xf32, #tpu.memory_space<vmem>>, vector<1x128xf32>
    %c2 = arith.constant 2 : index
    %c0_2 = arith.constant 0 : index
    %2 = vector.load %arg1[%c2, %c0_2] : memref<3x128xf32, #tpu.memory_space<vmem>>, vector<1x128xf32>
    %c0_3 = arith.constant 0 : index
    %c0_4 = arith.constant 0 : index
    %3 = vector.load %arg2[%c0_3, %c0_4] : memref<8x10xf32, #tpu.memory_space<vmem>>, vector<8x1xf32>
    %c0_5 = arith.constant 0 : index
    %c1_6 = arith.constant 1 : index
    %4 = vector.load %arg2[%c0_5, %c1_6] : memref<8x10xf32, #tpu.memory_space<vmem>>, vector<8x1xf32>
    %c0_7 = arith.constant 0 : index
    %c2_8 = arith.constant 2 : index
    %5 = vector.load %arg2[%c0_7, %c2_8] : memref<8x10xf32, #tpu.memory_space<vmem>>, vector<8x1xf32>
    %c0_9 = arith.constant 0 : index
    %c3 = arith.constant 3 : index
    %6 = vector.load %arg2[%c0_9, %c3] : memref<8x10xf32, #tpu.memory_space<vmem>>, vector<8x1xf32>
    %c0_10 = arith.constant 0 : index
    %c4 = arith.constant 4 : index
    %7 = vector.load %arg2[%c0_10, %c4] : memref<8x10xf32, #tpu.memory_space<vmem>>, vector<8x1xf32>
    %c0_11 = arith.constant 0 : index
    %c5 = arith.constant 5 : index
    %8 = vector.load %arg2[%c0_11, %c5] : memref<8x10xf32, #tpu.memory_space<vmem>>, vector<8x1xf32>
    %9 = vector.broadcast %0 : vector<1x128xf32> to vector<8x128xf32>
    %10 = vector.broadcast %3 : vector<8x1xf32> to vector<8x128xf32>
    %11 = arith.subf %9, %10 : vector<8x128xf32>
    %12 = vector.broadcast %2 : vector<1x128xf32> to vector<8x128xf32>
    %13 = arith.mulf %11, %12 : vector<8x128xf32>
    %14 = vector.broadcast %5 : vector<8x1xf32> to vector<8x128xf32>
    %15 = arith.subf %13, %14 : vector<8x128xf32>
    %16 = vector.broadcast %1 : vector<1x128xf32> to vector<8x128xf32>
    %17 = vector.broadcast %4 : vector<8x1xf32> to vector<8x128xf32>
    %18 = arith.subf %16, %17 : vector<8x128xf32>
    %19 = vector.broadcast %2 : vector<1x128xf32> to vector<8x128xf32>
    %20 = arith.mulf %18, %19 : vector<8x128xf32>
    %21 = vector.broadcast %6 : vector<8x1xf32> to vector<8x128xf32>
    %22 = arith.subf %20, %21 : vector<8x128xf32>
    %23 = arith.mulf %15, %15 : vector<8x128xf32>
    %24 = vector.broadcast %7 : vector<8x1xf32> to vector<8x128xf32>
    %25 = arith.mulf %23, %24 : vector<8x128xf32>
    %26 = arith.mulf %22, %22 : vector<8x128xf32>
    %27 = vector.broadcast %8 : vector<8x1xf32> to vector<8x128xf32>
    %28 = arith.mulf %26, %27 : vector<8x128xf32>
    %29 = arith.addf %25, %28 : vector<8x128xf32>
    %30 = math.exp %29 : vector<8x128xf32>
    %c0_12 = arith.constant 0 : index
    %c6 = arith.constant 6 : index
    %31 = vector.load %arg2[%c0_12, %c6] : memref<8x10xf32, #tpu.memory_space<vmem>>, vector<8x1xf32>
    %c0_13 = arith.constant 0 : index
    %c7 = arith.constant 7 : index
    %32 = vector.load %arg2[%c0_13, %c7] : memref<8x10xf32, #tpu.memory_space<vmem>>, vector<8x1xf32>
    %c0_14 = arith.constant 0 : index
    %c8 = arith.constant 8 : index
    %33 = vector.load %arg2[%c0_14, %c8] : memref<8x10xf32, #tpu.memory_space<vmem>>, vector<8x1xf32>
    %c0_15 = arith.constant 0 : index
    %c9 = arith.constant 9 : index
    %34 = vector.load %arg2[%c0_15, %c9] : memref<8x10xf32, #tpu.memory_space<vmem>>, vector<8x1xf32>
    %35 = vector.broadcast %0 : vector<1x128xf32> to vector<8x128xf32>
    %36 = vector.broadcast %31 : vector<8x1xf32> to vector<8x128xf32>
    %37 = arith.cmpf oge, %35, %36 : vector<8x128xf32>
    %38 = vector.broadcast %0 : vector<1x128xf32> to vector<8x128xf32>
    %39 = vector.broadcast %33 : vector<8x1xf32> to vector<8x128xf32>
    %40 = arith.cmpf ole, %38, %39 : vector<8x128xf32>
    %41 = arith.andi %37, %40 : vector<8x128xi1>
    %42 = vector.broadcast %1 : vector<1x128xf32> to vector<8x128xf32>
    %43 = vector.broadcast %32 : vector<8x1xf32> to vector<8x128xf32>
    %44 = arith.cmpf oge, %42, %43 : vector<8x128xf32>
    %45 = arith.andi %41, %44 : vector<8x128xi1>
    %46 = vector.broadcast %1 : vector<1x128xf32> to vector<8x128xf32>
    %47 = vector.broadcast %34 : vector<8x1xf32> to vector<8x128xf32>
    %48 = arith.cmpf ole, %46, %47 : vector<8x128xf32>
    %49 = arith.andi %45, %48 : vector<8x128xi1>
    %cst = arith.constant 0.000000e+00 : f32
    %50 = vector.broadcast %cst : f32 to vector<8x128xf32>
    %51 = arith.select %49, %30, %50 : vector<8x128xi1>, vector<8x128xf32>
    %c0_16 = arith.constant 0 : index
    %c0_17 = arith.constant 0 : index
    %52 = vector.load %arg3[%c0_16, %c0_17] : memref<8x128xf32, #tpu.memory_space<vmem>>, vector<8x128xf32>
    tpu.vector_store %arg3[%c0_16, %c0_17], %51 {strides = array<i32>} : memref<8x128xf32, #tpu.memory_space<vmem>>, vector<8x128xf32>,
    return
  }
  func.func @transform_0(%arg0: i32) -> (i32, i32) {
    %c0_i32 = arith.constant 0 : i32
    %c0_i32_0 = arith.constant 0 : i32
    return %c0_i32, %arg0 : i32, i32
  }
  func.func @transform_1(%arg0: i32) -> (i32, i32) {
    %c0_i32 = arith.constant 0 : i32
    %c0_i32_0 = arith.constant 0 : i32
    %c0_i32_1 = arith.constant 0 : i32
    return %c0_i32, %c0_i32_0 : i32, i32
  }
  func.func @transform_2(%arg0: i32) -> (i32, i32) {
    %c0_i32 = arith.constant 0 : i32
    %c0_i32_0 = arith.constant 0 : i32
    return %c0_i32, %arg0 : i32, i32
  }
}

</mosaic_0001>

<llo_original>
// kernel: tpu_custom_call.1
$region0: #{tpu_custom_call.1}
  #allocation0 [shape = 'u32[]', space=smem, size = 0x4, offset = 0x4, fixed_abs, tag = 'smem constant byte address 0x4 - core index']
  #allocation1 [shape = 'u32[144,128]{1,0:T(1,128)}', space=vmem, size = 0x12000, scoped, tag = 'internal scratch']
  %s0 = inlined_call_operand.hbm [shape: f32[3,128], index: 0, kind: input, shape index: {}]
  %s1 = inlined_call_operand.hbm [shape: f32[8,10], index: 1, kind: input, shape index: {}]
  %s2 = inlined_call_operand.hbm [shape: f32[8,128], index: 2, kind: output, shape index: {}]
  %s3 = sld [smem:[#allocation0]]
  $region26: #{tpu_custom_call.1} parent=0
    _
  %s5 = ssub.s32 1, %s3
  %s6 = scalar_select 0, %s5, %s3
  $region1: #{tpu_custom_call.1} parent=0
    #allocation2 [shape = 'u8[2048]{0}', space=vmem, size = 0x800, scoped, tag = 'input window, operand 0, single buffered']
    #allocation3 [shape = 's32[1]{0}', space=sflag, size = 0x4, scoped, tag = 'scoped memory for tpu_custom_call.1']
    #allocation4 [shape = 's32[1]{0}', space=sflag, size = 0x4, scoped, tag = 'scoped memory for tpu_custom_call.1']
    #allocation5 [shape = 'u8[4096]{0}', space=vmem, size = 0x1000, scoped, tag = 'input window, operand 1, single buffered']
    #allocation6 [shape = 's32[1]{0}', space=sflag, size = 0x4, scoped, tag = 'scoped memory for tpu_custom_call.1']
    #allocation7 [shape = 'u8[4096]{0}', space=vmem, size = 0x1000, scoped, tag = 'output window, operand 0, single buffered']
    %7 = vsyncpa [#allocation3], 0
    %8 = vsyncpa [#allocation6], 0
    %9 = vsyncpa [#allocation4], 0
    // Predicated region
    $region2: #{tpu_custom_call.1} parent=1 // pred_check
      _
    $region3: #{tpu_custom_call.1} parent=1 // pred_check_branch
      %11 = sbr.rel (0) target = $region5
    $region4: #{tpu_custom_call.1} parent=1 // pred_region
      %s13 = ssub.s32 64, 64
      %14 = vsyncadd [#allocation3], %s13
      %s16 = sshll.u32 [#allocation2], 4
      %s17 = int_to_ptr.vmem [resolvable:$true] %s16
      %19 = dma.hbm_to_vmem [thread:$0]  %s0, 64, %s17, [#allocation3]
    $region5: #{tpu_custom_call.1} parent=1 // pred_fallthru
      _
    // Predicated region
    $region6: #{tpu_custom_call.1} parent=1 // pred_check
      _
    $region7: #{tpu_custom_call.1} parent=1 // pred_check_branch
      %21 = sbr.rel (0) target = $region9
    $region8: #{tpu_custom_call.1} parent=1 // pred_region
      %s23 = ssub.s32 128, 128
      %24 = vsyncadd [#allocation6], %s23
      %s26 = sshll.u32 [#allocation5], 4
      %s27 = int_to_ptr.vmem [resolvable:$true] %s26
      %29 = dma.hbm_to_vmem [thread:$0]  %s1, 128, %s27, [#allocation6]
    $region9: #{tpu_custom_call.1} parent=1 // pred_fallthru
      _
    // Predicated region
    $region10: #{tpu_custom_call.1} parent=1 // pred_check
      _
    $region11: #{tpu_custom_call.1} parent=1 // pred_check_branch
      %31 = sbr.rel (0) target = $region13
    $region12: #{tpu_custom_call.1} parent=1 // pred_region
      %32 = dma.done [#allocation3], 64
    $region13: #{tpu_custom_call.1} parent=1 // pred_fallthru
      _
    // Predicated region
    $region14: #{tpu_custom_call.1} parent=1 // pred_check
      _
    $region15: #{tpu_custom_call.1} parent=1 // pred_check_branch
      %34 = sbr.rel (0) target = $region17
    $region16: #{tpu_custom_call.1} parent=1 // pred_region
      %35 = dma.done [#allocation6], 128
    $region17: #{tpu_custom_call.1} parent=1 // pred_fallthru
      _
    %v36 = vld [vmem:[#allocation2] sm:$0x1]
    %v37 = vld [vmem:[#allocation2 + $0x1] sm:$0x1]
    %v38 = vld [vmem:[#allocation2 + $0x2] sm:$0x1]
    %v39 = vld [vmem:[#allocation5] sm:$0xff]
    %v40 = vlaneseq
    %v41 = vshrl.u32 %v40, 7
    %v42 = vsub.s32 0, %v41
    %v43 = vrot.slane %v36, %v42
    %45 = vset.pattern.permute.xlu0 0
    %46 = vperm.xlu0 %45, %v39
    %v47 = vpop.permute.xlu0 %46
    %v49 = vsub.f32 %v43, %v47
    %v50 = vlaneseq
    %v51 = vshrl.u32 %v50, 7
    %v52 = vsub.s32 0, %v51
    %v53 = vrot.slane %v38, %v52
    %v54 = vmul.f32 %v49, %v53
    %55 = vset.pattern.permute.xlu0 2
    %56 = vperm.xlu0 %55, %v39
    %v57 = vpop.permute.xlu0 %56
    %v59 = vsub.f32 %v54, %v57
    %v60 = vlaneseq
    %v61 = vshrl.u32 %v60, 7
    %v62 = vsub.s32 0, %v61
    %v63 = vrot.slane %v37, %v62
    %64 = vset.pattern.permute.xlu0 1
    %65 = vperm.xlu0 %64, %v39
    %v66 = vpop.permute.xlu0 %65
    %v68 = vsub.f32 %v63, %v66
    %v69 = vmul.f32 %v68, %v53
    %70 = vset.pattern.permute.xlu0 3
    %71 = vperm.xlu0 %70, %v39
    %v72 = vpop.permute.xlu0 %71
    %v74 = vsub.f32 %v69, %v72
    %v75 = vmul.f32 %v59, %v59
    %76 = vset.pattern.permute.xlu0 4
    %77 = vperm.xlu0 %76, %v39
    %v78 = vpop.permute.xlu0 %77
    %v80 = vmul.f32 %v75, %v78
    %v81 = vmul.f32 %v74, %v74
    %82 = vset.pattern.permute.xlu0 5
    %83 = vperm.xlu0 %82, %v39
    %v84 = vpop.permute.xlu0 %83
    %v86 = vmul.f32 %v81, %v84
    %v87 = vadd.f32 %v80, %v86
    %v88 = vmul.f32 %v87, 1.442695
    %v89 = vpow.pop %v88
    %90 = vset.pattern.permute.xlu0 6
    %91 = vperm.xlu0 %90, %v39
    %v92 = vpop.permute.xlu0 %91
    %vm94 = vcmp.ge.f32.partialorder %v43, %v92
    %95 = vset.pattern.permute.xlu0 8
    %96 = vperm.xlu0 %95, %v39
    %v97 = vpop.permute.xlu0 %96
    %vm99 = vcmp.le.f32.partialorder %v43, %v97
    %vm100 = vmand %vm94, %vm99
    %101 = vset.pattern.permute.xlu0 7
    %102 = vperm.xlu0 %101, %v39
    %v103 = vpop.permute.xlu0 %102
    %vm105 = vcmp.ge.f32.partialorder %v63, %v103
    %vm106 = vmand %vm100, %vm105
    %107 = vset.pattern.permute.xlu0 9
    %108 = vperm.xlu0 %107, %v39
    %v109 = vpop.permute.xlu0 %108
    %vm111 = vcmp.le.f32.partialorder %v63, %v109
    %vm112 = vmand %vm106, %vm111
    %v113 = vsel %vm112, %v89, 0.0
    %114 = vst [vmem:[#allocation7] sm:$0xff] %v113
    // Predicated region
    $region18: #{tpu_custom_call.1} parent=1 // pred_check
      _
    $region19: #{tpu_custom_call.1} parent=1 // pred_check_branch
      %116 = sbr.rel (0) target = $region21
    $region20: #{tpu_custom_call.1} parent=1 // pred_region
      %s118 = ssub.s32 128, 128
      %119 = vsyncadd [#allocation4], %s118
      %s121 = sshll.u32 [#allocation7], 4
      %s122 = int_to_ptr.vmem [resolvable:$true] %s121
      %124 = dma.vmem_to_hbm [thread:$0]  %s122, 128, %s2, [#allocation4]
    $region21: #{tpu_custom_call.1} parent=1 // pred_fallthru
      _
    // Predicated region
    $region22: #{tpu_custom_call.1} parent=1 // pred_check
      _
    $region23: #{tpu_custom_call.1} parent=1 // pred_check_branch
      %126 = sbr.rel (0) target = $region25
    $region24: #{tpu_custom_call.1} parent=1 // pred_region
      %127 = dma.done [#allocation4], 128
    $region25: #{tpu_custom_call.1} parent=1 // pred_fallthru
      _
    %128 = vsyncpa [#allocation3], 1
    %129 = vsyncpa [#allocation6], 1
    %130 = vsyncpa [#allocation4], 1

</llo_original>
